<compile_context>
chip_gen: v6e
topology: v6e:2x2x1
jax: 0.10.0
libtpu: 0.0.40
codegen_flags: <defaults>
</compile_context>

<pallas_src>
import functools

import jax
import jax.numpy as jnp
from jax import lax
from jax.experimental import pallas as pl
from jax.experimental.pallas import tpu as pltpu


def _round_up(x, m):
    return (x + m - 1) // m * m


def _cdiv(a, b):
    return (a + b - 1) // b


def _critic_mlp_kernel(x_ref, w1_ref, b1_ref, w2_ref, b2_ref, w3_ref, b3_ref,
                       out_ref):
    """One batch tile, transposed orientation: intermediates are (hidden, TB)."""
    x = x_ref[...]                      # (TB, state_dim)
    w1 = w1_ref[...]                    # (state_dim, hidden)
    if x.dtype != w1.dtype:             # bf16 path: cast after load (no extra HBM pass)
        x = x.astype(w1.dtype)

    # h1^T = w1^T @ x^T  -> (hidden, TB), lane-dense.
    h1 = lax.dot_general(
        w1, x,
        dimension_numbers=(((0,), (1,)), ((), ())),
        preferred_element_type=jnp.float32)
    h1 = jnp.tanh(h1 + b1_ref[...])     # b1: (hidden, 1) broadcasts over TB

    w2 = w2_ref[...]                    # (hidden, hidden)  [in, out]
    h1 = h1.astype(w2.dtype)
    # h2^T = w2^T @ h1^T -> (hidden, TB)
    h2 = lax.dot_general(
        w2, h1,
        dimension_numbers=(((0,), (0,)), ((), ())),
        preferred_element_type=jnp.float32)
    h2 = jnp.tanh(h2 + b2_ref[...])     # b2: (hidden, 1)

    # Final Linear(hidden, 1): (1, hidden) x (hidden, TB) -> (1, TB), lane-dense.
    v = lax.dot_general(
        w3_ref[...], h2,
        dimension_numbers=(((1,), (0,)), ((), ())),
        preferred_element_type=jnp.float32)
    v = v + b3_ref[...]                 # (1, TB) + (1, 1)
    out_ref[...] = v.reshape(out_ref.shape).astype(out_ref.dtype)


@functools.partial(jax.jit, static_argnames=("block_b", "compute_dtype"))
def gaussian_critic_mlp(x, params, *, block_b=4096, compute_dtype=None):
    """Forward pass of GaussianCriticMlpNet. x: [B, state_dim] -> [B, 1]."""
    w1, b1, w2, b2, w3, b3 = params
    B, state_dim = x.shape
    hidden = w1.shape[1]

    # bf16 path: cast only the tiny, VMEM-resident weights in the wrapper.
    # x stays in its original dtype in HBM and is cast inside the kernel, so no
    # extra HBM round trip is added.  (On v5e there is no bf16 VPU/EUP; the f32
    # default is the right choice there unless x already arrives as bf16.)
    if compute_dtype is not None:
        w1 = w1.astype(compute_dtype)
        w2 = w2.astype(compute_dtype)

    # Biases as columns / final layer as a row for the transposed orientation.
    b1_col = b1.reshape(hidden, 1).astype(jnp.float32)
    b2_col = b2.reshape(hidden, 1).astype(jnp.float32)
    w3_row = w3.reshape(1, hidden).astype(jnp.float32)
    b3_s = b3.reshape(1, 1).astype(jnp.float32)

    assert block_b >= 128 and block_b % 128 == 0, "block_b must be a multiple of 128"
    # Batch tile: big (overhead-bound kernel) but capped so large batches keep
    # >= 2 grid steps (v7x megacore).
    half = _round_up(_cdiv(B, 2), 128)
    tb = max(128, min(block_b, half))
    num_tiles = _cdiv(B, tb)

    # Only pad when the whole batch is smaller than one tile (a handful of rows);
    # otherwise rely on Pallas partial last-block handling (no full-array copy).
    if B < tb:
        x = jnp.pad(x, ((0, tb - B), (0, 0)))

    out = pl.pallas_call(
        _critic_mlp_kernel,
        out_shape=jax.ShapeDtypeStruct((num_tiles, 1, tb), jnp.float32),
        grid=(num_tiles,),
        in_specs=[
            pl.BlockSpec((tb, state_dim), lambda i: (i, 0)),      # x batch tile
            pl.BlockSpec((state_dim, hidden), lambda i: (0, 0)),  # w1 (resident)
            pl.BlockSpec((hidden, 1), lambda i: (0, 0)),          # b1 column
            pl.BlockSpec((hidden, hidden), lambda i: (0, 0)),     # w2
            pl.BlockSpec((hidden, 1), lambda i: (0, 0)),          # b2 column
            pl.BlockSpec((1, hidden), lambda i: (0, 0)),          # w3 row
            pl.BlockSpec((1, 1), lambda i: (0, 0)),               # b3
        ],
        out_specs=pl.BlockSpec((1, 1, tb), lambda i: (i, 0, 0)),
        compiler_params=pltpu.CompilerParams(
            dimension_semantics=("parallel",)),
    )(x, w1, b1_col, w2, b2_col, w3_row, b3_s)

    # Lane-dense slab -> (B, 1) column (wrapper-side layout plumbing only).
    return out.reshape(num_tiles * tb)[:B].reshape(B, 1)


def init_params(key, state_dim, hidden_size):
    """PyTorch nn.Linear-style init (U[-1/sqrt(in), 1/sqrt(in)]).

    Weights stored as [in_features, out_features]; biases as [1, out_features].
    """
    def linear(key, fan_in, fan_out):
        kw, kb = jax.random.split(key)
        bound = 1.0 / jnp.sqrt(fan_in)
        w = jax.random.uniform(kw, (fan_in, fan_out), jnp.float32, -bound, bound)
        b = jax.random.uniform(kb, (1, fan_out), jnp.float32, -bound, bound)
        return w, b

    k1, k2, k3 = jax.random.split(key, 3)
    w1, b1 = linear(k1, state_dim, hidden_size)
    w2, b2 = linear(k2, hidden_size, hidden_size)
    w3, b3 = linear(k3, hidden_size, 1)
    return (w1, b1, w2, b2, w3, b3)


def _reference(x, params):
    w1, b1, w2, b2, w3, b3 = params
    h1 = jnp.tanh(x @ w1 + b1)
    h2 = jnp.tanh(h1 @ w2 + b2)
    return h2 @ w3 + b3


if __name__ == "__main__":
    state_dim = 16
    hidden_size = 32

    key = jax.random.PRNGKey(0)
    kx, kp, kx2 = jax.random.split(key, 3)
    params = init_params(kp, state_dim, hidden_size)

    # 1) Small batch (single tile, padded to one 128-row tile), exact f32 path.
    batch = 8
    x = jax.random.normal(kx, (batch, state_dim), dtype=jnp.float32)
    value = jax.block_until_ready(gaussian_critic_mlp(x, params))
    assert value.shape == (batch, 1), value.shape
    ref = _reference(x, params)
    assert jnp.allclose(value, ref, atol=1e-5, rtol=1e-5), "f32 mismatch"

    # 2) Multi-tile grid + ragged last block (300 rows, 128-row tiles -> 3 steps,
    #    last block partial), no wrapper-side pad of x.
    batch2 = 300
    x2 = jax.random.normal(kx2, (batch2, state_dim), dtype=jnp.float32)
    value2 = jax.block_until_ready(gaussian_critic_mlp(x2, params, block_b=128))
    assert value2.shape == (batch2, 1), value2.shape
    ref2 = _reference(x2, params)
    assert jnp.allclose(value2, ref2, atol=1e-5, rtol=1e-5), "multi-tile mismatch"

    # 3) bf16 compute path: weights cast in wrapper, x cast inside the kernel
    #    (no extra HBM pass); f32 accumulation / tanh / final layer.
    value_bf16 = jax.block_until_ready(
        gaussian_critic_mlp(x2, params, block_b=128, compute_dtype=jnp.bfloat16))
    assert value_bf16.shape == (batch2, 1)
    assert jnp.allclose(value_bf16, ref2, atol=5e-2, rtol=5e-2), "bf16 mismatch"

    print("KERNEL_OK")
</pallas_src>

<mosaic_0001>
module attributes {stable_mosaic.version = 11 : i64} {
  func.func @_critic_mlp_kernel(%arg0: i32, %arg1: memref<128x16xf32, #tpu.memory_space<vmem>>, %arg2: memref<16x32xf32, #tpu.memory_space<vmem>>, %arg3: memref<32x1xf32, #tpu.memory_space<vmem>>, %arg4: memref<32x32xf32, #tpu.memory_space<vmem>>, %arg5: memref<32x1xf32, #tpu.memory_space<vmem>>, %arg6: memref<1x32xf32, #tpu.memory_space<vmem>>, %arg7: memref<1x1xf32, #tpu.memory_space<vmem>>, %arg8: memref<1x1x128xf32, #tpu.memory_space<vmem>>) attributes {dimension_semantics = [#tpu.dimension_semantics<parallel>], iteration_bounds = array<i64: 1>, scalar_prefetch = 0 : i64, scratch_operands = 0 : i64, tpu.core_type = #tpu.core_type<tc>, window_params = [{transform_indices = @transform_0, window_bounds = array<i64: 128, 16>}, {pipeline_mode = #tpu.pipeline_mode<synchronous>, transform_indices = @transform_1, window_bounds = array<i64: 16, 32>}, {pipeline_mode = #tpu.pipeline_mode<synchronous>, transform_indices = @transform_2, window_bounds = array<i64: 32, 1>}, {pipeline_mode = #tpu.pipeline_mode<synchronous>, transform_indices = @transform_3, window_bounds = array<i64: 32, 32>}, {pipeline_mode = #tpu.pipeline_mode<synchronous>, transform_indices = @transform_4, window_bounds = array<i64: 32, 1>}, {pipeline_mode = #tpu.pipeline_mode<synchronous>, transform_indices = @transform_5, window_bounds = array<i64: 1, 32>}, {pipeline_mode = #tpu.pipeline_mode<synchronous>, transform_indices = @transform_6, window_bounds = array<i64: 1, 1>}, {transform_indices = @transform_7, window_bounds = array<i64: 1, 1, 128>}]} {
    %c0 = arith.constant 0 : index
    %c0_0 = arith.constant 0 : index
    %0 = vector.load %arg1[%c0, %c0_0] : memref<128x16xf32, #tpu.memory_space<vmem>>, vector<128x16xf32>
    %c0_1 = arith.constant 0 : index
    %c0_2 = arith.constant 0 : index
    %1 = vector.load %arg2[%c0_1, %c0_2] : memref<16x32xf32, #tpu.memory_space<vmem>>, vector<16x32xf32>
    %cst = arith.constant dense<0.000000e+00> : vector<32x128xf32>
    %2 = tpu.matmul %1, %0, %cst {dimension_numbers = #tpu.dot_dimension_numbers<[0], [1], [1], [0], [0, 1, 1, 0], [], []>} : vector<16x32xf32>, vector<128x16xf32>, vector<32x128xf32> -> vector<32x128xf32>
    %c0_3 = arith.constant 0 : index
    %c0_4 = arith.constant 0 : index
    %3 = vector.load %arg3[%c0_3, %c0_4] : memref<32x1xf32, #tpu.memory_space<vmem>>, vector<32x1xf32>
    %4 = vector.broadcast %3 : vector<32x1xf32> to vector<32x128xf32>
    %5 = arith.addf %2, %4 : vector<32x128xf32>
    %6 = math.tanh %5 : vector<32x128xf32>
    %c0_5 = arith.constant 0 : index
    %c0_6 = arith.constant 0 : index
    %7 = vector.load %arg4[%c0_5, %c0_6] : memref<32x32xf32, #tpu.memory_space<vmem>>, vector<32x32xf32>
    %cst_7 = arith.constant dense<0.000000e+00> : vector<32x128xf32>
    %8 = tpu.matmul %7, %6, %cst_7 {dimension_numbers = #tpu.dot_dimension_numbers<[0], [0], [1], [1], [0, 1, 1, 1], [], []>} : vector<32x32xf32>, vector<32x128xf32>, vector<32x128xf32> -> vector<32x128xf32>
    %c0_8 = arith.constant 0 : index
    %c0_9 = arith.constant 0 : index
    %9 = vector.load %arg5[%c0_8, %c0_9] : memref<32x1xf32, #tpu.memory_space<vmem>>, vector<32x1xf32>
    %10 = vector.broadcast %9 : vector<32x1xf32> to vector<32x128xf32>
    %11 = arith.addf %8, %10 : vector<32x128xf32>
    %12 = math.tanh %11 : vector<32x128xf32>
    %c0_10 = arith.constant 0 : index
    %c0_11 = arith.constant 0 : index
    %13 = vector.load %arg6[%c0_10, %c0_11] : memref<1x32xf32, #tpu.memory_space<vmem>>, vector<1x32xf32>
    %cst_12 = arith.constant dense<0.000000e+00> : vector<1x128xf32>
    %14 = tpu.matmul %13, %12, %cst_12 {dimension_numbers = #tpu.dot_dimension_numbers<[1], [0], [0], [1], [0, 0, 1, 1], [], []>} : vector<1x32xf32>, vector<32x128xf32>, vector<1x128xf32> -> vector<1x128xf32>
    %c0_13 = arith.constant 0 : index
    %c0_14 = arith.constant 0 : index
    %15 = vector.load %arg7[%c0_13, %c0_14] : memref<1x1xf32, #tpu.memory_space<vmem>>, vector<1x1xf32>
    %16 = vector.broadcast %15 : vector<1x1xf32> to vector<1x128xf32>
    %17 = arith.addf %14, %16 : vector<1x128xf32>
    %18 = vector.shape_cast %17 : vector<1x128xf32> to vector<1x1x128xf32>
    %c0_15 = arith.constant 0 : index
    %c0_16 = arith.constant 0 : index
    %c0_17 = arith.constant 0 : index
    %19 = vector.load %arg8[%c0_15, %c0_16, %c0_17] : memref<1x1x128xf32, #tpu.memory_space<vmem>>, vector<1x1x128xf32>
    tpu.vector_store %arg8[%c0_15, %c0_16, %c0_17], %18 {strides = array<i32>} : memref<1x1x128xf32, #tpu.memory_space<vmem>>, vector<1x1x128xf32>,
    return
  }
  func.func @transform_0(%arg0: i32) -> (i32, i32) {
    %c0_i32 = arith.constant 0 : i32
    %c0_i32_0 = arith.constant 0 : i32
    return %arg0, %c0_i32 : i32, i32
  }
  func.func @transform_1(%arg0: i32) -> (i32, i32) {
    %c0_i32 = arith.constant 0 : i32
    %c0_i32_0 = arith.constant 0 : i32
    %c0_i32_1 = arith.constant 0 : i32
    return %c0_i32, %c0_i32_0 : i32, i32
  }
  func.func @transform_2(%arg0: i32) -> (i32, i32) {
    %c0_i32 = arith.constant 0 : i32
    %c0_i32_0 = arith.constant 0 : i32
    %c0_i32_1 = arith.constant 0 : i32
    return %c0_i32, %c0_i32_0 : i32, i32
  }
  func.func @transform_3(%arg0: i32) -> (i32, i32) {
    %c0_i32 = arith.constant 0 : i32
    %c0_i32_0 = arith.constant 0 : i32
    %c0_i32_1 = arith.constant 0 : i32
    return %c0_i32, %c0_i32_0 : i32, i32
  }
  func.func @transform_4(%arg0: i32) -> (i32, i32) {
    %c0_i32 = arith.constant 0 : i32
    %c0_i32_0 = arith.constant 0 : i32
    %c0_i32_1 = arith.constant 0 : i32
    return %c0_i32, %c0_i32_0 : i32, i32
  }
  func.func @transform_5(%arg0: i32) -> (i32, i32) {
    %c0_i32 = arith.constant 0 : i32
    %c0_i32_0 = arith.constant 0 : i32
    %c0_i32_1 = arith.constant 0 : i32
    return %c0_i32, %c0_i32_0 : i32, i32
  }
  func.func @transform_6(%arg0: i32) -> (i32, i32) {
    %c0_i32 = arith.constant 0 : i32
    %c0_i32_0 = arith.constant 0 : i32
    %c0_i32_1 = arith.constant 0 : i32
    return %c0_i32, %c0_i32_0 : i32, i32
  }
  func.func @transform_7(%arg0: i32) -> (i32, i32, i32) {
    %c0_i32 = arith.constant 0 : i32
    %c0_i32_0 = arith.constant 0 : i32
    %c0_i32_1 = arith.constant 0 : i32
    return %arg0, %c0_i32, %c0_i32_0 : i32, i32, i32
  }
}

</mosaic_0001>

<llo_original>
// kernel: gaussian_critic_mlp.1
$region0: #{gaussian_critic_mlp.1}
  #allocation0 [shape = 'u32[]', space=smem, size = 0x4, offset = 0x4, fixed_abs, tag = 'smem constant byte address 0x4 - core index']
  #allocation1 [shape = 'u32[144,128]{1,0:T(1,128)}', space=vmem, size = 0x12000, scoped, tag = 'internal scratch']
  #allocation2 [shape = 'f32[1,1]{1,0:T(1,128)S(1)}', space=vmem, size = 0x200, scoped, tag = 'scoped memory for gaussian_critic_mlp.1']
  %s0 = inlined_call_operand.vmem [shape: f32[128,16], index: 0, kind: input, shape index: {}]
  %s1 = inlined_call_operand.vmem [shape: f32[16,32], index: 1, kind: input, shape index: {}]
  %s2 = inlined_call_operand.vmem [shape: f32[32,1], index: 2, kind: input, shape index: {}]
  %s3 = inlined_call_operand.vmem [shape: f32[32,32], index: 3, kind: input, shape index: {}]
  %s4 = inlined_call_operand.vmem [shape: f32[32,1], index: 4, kind: input, shape index: {}]
  %s5 = inlined_call_operand.vmem [shape: f32[1,32], index: 5, kind: input, shape index: {}]
  %s6 = inlined_call_operand.<no memory space> [shape: f32[1,1], index: 6, kind: input, shape index: {}]
  %s7 = inlined_call_operand.vmem [shape: f32[1,1,128], index: 7, kind: output, shape index: {}]
  %s8 = sld [smem:[#allocation0]]
  $region38: #{gaussian_critic_mlp.1} parent=0
    _
  %s10 = ssub.s32 1, %s8
  %s11 = scalar_select 0, %s10, %s8
  %v12 = vstv %s6
  %13 = vst [vmem:[#allocation2] sm:$0x1] %v12
  // Predicated region
  $region2: #{gaussian_critic_mlp.1} parent=0 // pred_check
    _
  $region3: #{gaussian_critic_mlp.1} parent=0 // pred_check_branch
    %15 = sbr.rel (0) target = $region5
  $region4: #{gaussian_critic_mlp.1} parent=0 // pred_region
    _
  $region5: #{gaussian_critic_mlp.1} parent=0 // pred_fallthru
    _
  // Predicated region
  $region6: #{gaussian_critic_mlp.1} parent=0 // pred_check
    _
  $region7: #{gaussian_critic_mlp.1} parent=0 // pred_check_branch
    %17 = sbr.rel (0) target = $region9
  $region8: #{gaussian_critic_mlp.1} parent=0 // pred_region
    _
  $region9: #{gaussian_critic_mlp.1} parent=0 // pred_fallthru
    _
  // Predicated region
  $region10: #{gaussian_critic_mlp.1} parent=0 // pred_check
    _
  $region11: #{gaussian_critic_mlp.1} parent=0 // pred_check_branch
    %19 = sbr.rel (0) target = $region13
  $region12: #{gaussian_critic_mlp.1} parent=0 // pred_region
    _
  $region13: #{gaussian_critic_mlp.1} parent=0 // pred_fallthru
    _
  // Predicated region
  $region14: #{gaussian_critic_mlp.1} parent=0 // pred_check
    _
  $region15: #{gaussian_critic_mlp.1} parent=0 // pred_check_branch
    %21 = sbr.rel (0) target = $region17
  $region16: #{gaussian_critic_mlp.1} parent=0 // pred_region
    _
  $region17: #{gaussian_critic_mlp.1} parent=0 // pred_fallthru
    _
  // Predicated region
  $region18: #{gaussian_critic_mlp.1} parent=0 // pred_check
    _
  $region19: #{gaussian_critic_mlp.1} parent=0 // pred_check_branch
    %23 = sbr.rel (0) target = $region21
  $region20: #{gaussian_critic_mlp.1} parent=0 // pred_region
    _
  $region21: #{gaussian_critic_mlp.1} parent=0 // pred_fallthru
    _
  // Predicated region
  $region22: #{gaussian_critic_mlp.1} parent=0 // pred_check
    _
  $region23: #{gaussian_critic_mlp.1} parent=0 // pred_check_branch
    %25 = sbr.rel (0) target = $region25
  $region24: #{gaussian_critic_mlp.1} parent=0 // pred_region
    _
  $region25: #{gaussian_critic_mlp.1} parent=0 // pred_fallthru
    _
  // Predicated region
  $region26: #{gaussian_critic_mlp.1} parent=0 // pred_check
    _
  $region27: #{gaussian_critic_mlp.1} parent=0 // pred_check_branch
    %27 = sbr.rel (0) target = $region29
  $region28: #{gaussian_critic_mlp.1} parent=0 // pred_region
    _
  $region29: #{gaussian_critic_mlp.1} parent=0 // pred_fallthru
    _
  %v28 = vld [vmem:[%s0] sm:$0xff]
  %v29 = vld [vmem:[%s0 + $0x8] sm:$0xff]
  %v30 = vld [vmem:[%s0 + $0x10] sm:$0xff]
  %v31 = vld [vmem:[%s0 + $0x18] sm:$0xff]
  %v32 = vld [vmem:[%s0 + $0x20] sm:$0xff]
  %v33 = vld [vmem:[%s0 + $0x28] sm:$0xff]
  %v34 = vld [vmem:[%s0 + $0x30] sm:$0xff]
  %v35 = vld [vmem:[%s0 + $0x38] sm:$0xff]
  %v36 = vld [vmem:[%s0 + $0x40] sm:$0xff]
  %v37 = vld [vmem:[%s0 + $0x48] sm:$0xff]
  %v38 = vld [vmem:[%s0 + $0x50] sm:$0xff]
  %v39 = vld [vmem:[%s0 + $0x58] sm:$0xff]
  %v40 = vld [vmem:[%s0 + $0x60] sm:$0xff]
  %v41 = vld [vmem:[%s0 + $0x68] sm:$0xff]
  %v42 = vld [vmem:[%s0 + $0x70] sm:$0xff]
  %v43 = vld [vmem:[%s0 + $0x78] sm:$0xff]
  %v44 = vld [vmem:[%s1] sm:$0xff]
  %v45 = vld [vmem:[%s1 + $0x8] sm:$0xff]
  %v46 = vld [vmem:[%s2] sm:$0xff]
  %v47 = vld [vmem:[%s2 + $0x8] sm:$0xff]
  %v48 = vld [vmem:[%s2 + $0x10] sm:$0xff]
  %v49 = vld [vmem:[%s2 + $0x18] sm:$0xff]
  %51 = vset.pattern.permute.xlu0 0
  %52 = vperm.xlu0 %51, %v46
  %v53 = vpop.permute.xlu0 %52
  %56 = vset.pattern.permute.xlu0 0
  %57 = vperm.xlu0 %56, %v47
  %v58 = vpop.permute.xlu0 %57
  %61 = vset.pattern.permute.xlu0 0
  %62 = vperm.xlu0 %61, %v48
  %v63 = vpop.permute.xlu0 %62
  %66 = vset.pattern.permute.xlu0 0
  %67 = vperm.xlu0 %66, %v49
  %v68 = vpop.permute.xlu0 %67
  %70 = vxpose.xlu0.b32.start [1/16] %v44, 128
  %71 = vxpose.xlu0.b32.cont [2/16] %v45, 128
  %72 = vxpose.xlu0.b32.cont [3/16] 0.0, 128
  %73 = vxpose.xlu0.b32.cont [4/16] 0.0, 128
  %74 = vxpose.xlu0.b32.cont [5/16] 0.0, 128
  %75 = vxpose.xlu0.b32.cont [6/16] 0.0, 128
  %76 = vxpose.xlu0.b32.cont [7/16] 0.0, 128
  %77 = vxpose.xlu0.b32.cont [8/16] 0.0, 128
  %78 = vxpose.xlu0.b32.cont [9/16] 0.0, 128
  %79 = vxpose.xlu0.b32.cont [10/16] 0.0, 128
  %80 = vxpose.xlu0.b32.cont [11/16] 0.0, 128
  %81 = vxpose.xlu0.b32.cont [12/16] 0.0, 128
  %82 = vxpose.xlu0.b32.cont [13/16] 0.0, 128
  %83 = vxpose.xlu0.b32.cont [14/16] 0.0, 128
  %84 = vxpose.xlu0.b32.cont [15/16] 0.0, 128
  %85 = vxpose.xlu0.b32.end [16/16] 0.0, 128
  %v86 = vpop.trf.xlu0
  %v87 = vpop.trf.xlu0
  %v88 = vpop.trf.xlu0
  %v89 = vpop.trf.xlu0
  %v90 = vpop.trf.xlu0
  %v91 = vpop.trf.xlu0
  %v92 = vpop.trf.xlu0
  %v93 = vpop.trf.xlu0
  %v94 = vpop.trf.xlu0
  %v95 = vpop.trf.xlu0
  %v96 = vpop.trf.xlu0
  %v97 = vpop.trf.xlu0
  %v98 = vpop.trf.xlu0
  %v99 = vpop.trf.xlu0
  %v100 = vpop.trf.xlu0
  %v101 = vpop.trf.xlu0
  %vm102 = vcmask 130048
  %v104 = vsel %vm102, %v86, 0
  %v107 = vsel %vm102, %v87, 0
  %v110 = vsel %vm102, %v88, 0
  %v113 = vsel %vm102, %v89, 0
  %v116 = vsel %vm102, %v28, 0
  %v119 = vsel %vm102, %v29, 0
  %v122 = vsel %vm102, %v30, 0
  %v125 = vsel %vm102, %v31, 0
  %v128 = vsel %vm102, %v32, 0
  %v131 = vsel %vm102, %v33, 0
  %v134 = vsel %vm102, %v34, 0
  %v137 = vsel %vm102, %v35, 0
  %v140 = vsel %vm102, %v36, 0
  %v143 = vsel %vm102, %v37, 0
  %v146 = vsel %vm102, %v38, 0
  %v149 = vsel %vm102, %v39, 0
  %v152 = vsel %vm102, %v40, 0
  %v155 = vsel %vm102, %v41, 0
  %v158 = vsel %vm102, %v42, 0
  %v161 = vsel %vm102, %v43, 0
  %163 = vmatprep.subr.mxu0 0.0
  %164 = vmatpush1.xpose.msra.mxu0 %v161
  %165 = vmatprep.subr.mxu0 0.0
  %166 = vmatpush1.xpose.msra.mxu0 %v158
  %167 = vmatprep.subr.mxu0 0.0
  %168 = vmatpush1.xpose.msra.mxu0 %v155
  %169 = vmatprep.subr.mxu0 0.0
  %170 = vmatpush1.xpose.msra.mxu0 %v152
  %171 = vmatprep.subr.mxu0 0.0
  %172 = vmatpush1.xpose.msra.mxu0 %v149
  %173 = vmatprep.subr.mxu0 0.0
  %174 = vmatpush1.xpose.msra.mxu0 %v146
  %175 = vmatprep.subr.mxu0 0.0
  %176 = vmatpush1.xpose.msra.mxu0 %v143
  %177 = vmatprep.subr.mxu0 0.0
  %178 = vmatpush1.xpose.msra.mxu0 %v140
  %179 = vmatprep.subr.mxu0 0.0
  %180 = vmatpush1.xpose.msra.mxu0 %v137
  %181 = vmatprep.subr.mxu0 0.0
  %182 = vmatpush1.xpose.msra.mxu0 %v134
  %183 = vmatprep.subr.mxu0 0.0
  %184 = vmatpush1.xpose.msra.mxu0 %v131
  %185 = vmatprep.subr.mxu0 0.0
  %186 = vmatpush1.xpose.msra.mxu0 %v128
  %187 = vmatprep.subr.mxu0 0.0
  %188 = vmatpush1.xpose.msra.mxu0 %v125
  %189 = vmatprep.subr.mxu0 0.0
  %190 = vmatpush1.xpose.msra.mxu0 %v122
  %191 = vmatprep.subr.mxu0 0.0
  %192 = vmatpush1.xpose.msra.mxu0 %v119
  %193 = vmatprep.subr.mxu0 0.0
  %194 = vmatpush1.xpose.msra.mxu0 %v116
  %195 = vmatprep.subr.mxu0 0.0
  %196 = vmatpush2.xpose.msra.mxu0 0.0
  %197 = vmatprep.subr.mxu0 0.0
  %198 = vmatpush2.xpose.msra.mxu0 0.0
  %199 = vmatprep.subr.mxu0 0.0
  %200 = vmatpush2.xpose.msra.mxu0 0.0
  %201 = vmatprep.subr.mxu0 0.0
  %202 = vmatpush2.xpose.msra.mxu0 0.0
  %203 = vmatprep.subr.mxu0 0.0
  %204 = vmatpush2.xpose.msra.mxu0 0.0
  %205 = vmatprep.subr.mxu0 0.0
  %206 = vmatpush2.xpose.msra.mxu0 0.0
  %207 = vmatprep.subr.mxu0 0.0
  %208 = vmatpush2.xpose.msra.mxu0 0.0
  %209 = vmatprep.subr.mxu0 0.0
  %210 = vmatpush2.xpose.msra.mxu0 0.0
  %211 = vmatprep.subr.mxu0 0.0
  %212 = vmatpush2.xpose.msra.mxu0 0.0
  %213 = vmatprep.subr.mxu0 0.0
  %214 = vmatpush2.xpose.msra.mxu0 0.0
  %215 = vmatprep.subr.mxu0 0.0
  %216 = vmatpush2.xpose.msra.mxu0 0.0
  %217 = vmatprep.subr.mxu0 0.0
  %218 = vmatpush2.xpose.msra.mxu0 0.0
  %219 = vmatprep.subr.mxu0 0.0
  %220 = vmatpush2.xpose.msra.mxu0 0.0
  %221 = vmatprep.subr.mxu0 0.0
  %222 = vmatpush2.xpose.msra.mxu0 0.0
  %223 = vmatprep.subr.mxu0 0.0
  %224 = vmatpush2.xpose.msra.mxu0 0.0
  %225 = vmatprep.subr.mxu0 0.0
  %226 = vmatpush2.xpose.msra.mxu0 0.0
  %227 = vmatprep.mubr.f32.mxu0 0.0
  %228 = vmatmul.mubr.f32.gmra.mxu0 %v104
  %v229 = vpop.f32.mrf.mxu0
  %v230 = vadd.f32 %v53, %v229
  %v231 = vpop.f32.mrf.mxu0
  %232 = vmatprep.mubr.f32.mxu0 0.0
  %233 = vmatmul.mubr.f32.gmra.mxu0 %v107
  %v234 = vpop.f32.mrf.mxu0
  %v235 = vadd.f32 %v58, %v234
  %v236 = vpop.f32.mrf.mxu0
  %237 = vmatprep.mubr.f32.mxu0 0.0
  %238 = vmatmul.mubr.f32.gmra.mxu0 %v110
  %v239 = vpop.f32.mrf.mxu0
  %v240 = vadd.f32 %v63, %v239
  %v241 = vpop.f32.mrf.mxu0
  %242 = vmatprep.mubr.f32.mxu0 0.0
  %243 = vmatmul.mubr.f32.gmra.mxu0 %v113
  %v244 = vpop.f32.mrf.mxu0
  %v245 = vadd.f32 %v68, %v244
  %v246 = vpop.f32.mrf.mxu0
  %247 = vdwg.mxu0
  %v248 = vtanh.pop %v230
  %v249 = vtanh.pop %v235
  %v250 = vtanh.pop %v240
  %v251 = vtanh.pop %v245
  %v252 = vld [vmem:[%s3] sm:$0xff]
  %v253 = vld [vmem:[%s3 + $0x8] sm:$0xff]
  %v254 = vld [vmem:[%s3 + $0x10] sm:$0xff]
  %v255 = vld [vmem:[%s3 + $0x18] sm:$0xff]
  %v256 = vld [vmem:[%s4] sm:$0xff]
  %v257 = vld [vmem:[%s4 + $0x8] sm:$0xff]
  %v258 = vld [vmem:[%s4 + $0x10] sm:$0xff]
  %v259 = vld [vmem:[%s4 + $0x18] sm:$0xff]
  %261 = vset.pattern.permute.xlu0 0
  %262 = vperm.xlu0 %261, %v256
  %v263 = vpop.permute.xlu0 %262
  %266 = vset.pattern.permute.xlu0 0
  %267 = vperm.xlu0 %266, %v257
  %v268 = vpop.permute.xlu0 %267
  %271 = vset.pattern.permute.xlu0 0
  %272 = vperm.xlu0 %271, %v258
  %v273 = vpop.permute.xlu0 %272
  %276 = vset.pattern.permute.xlu0 0
  %277 = vperm.xlu0 %276, %v259
  %v278 = vpop.permute.xlu0 %277
  %280 = vxpose.xlu0.b32.start [1/16] %v252, 128
  %281 = vxpose.xlu0.b32.cont [2/16] %v253, 128
  %282 = vxpose.xlu0.b32.cont [3/16] %v254, 128
  %283 = vxpose.xlu0.b32.cont [4/16] %v255, 128
  %284 = vxpose.xlu0.b32.cont [5/16] 0.0, 128
  %285 = vxpose.xlu0.b32.cont [6/16] 0.0, 128
  %286 = vxpose.xlu0.b32.cont [7/16] 0.0, 128
  %287 = vxpose.xlu0.b32.cont [8/16] 0.0, 128
  %288 = vxpose.xlu0.b32.cont [9/16] 0.0, 128
  %289 = vxpose.xlu0.b32.cont [10/16] 0.0, 128
  %290 = vxpose.xlu0.b32.cont [11/16] 0.0, 128
  %291 = vxpose.xlu0.b32.cont [12/16] 0.0, 128
  %292 = vxpose.xlu0.b32.cont [13/16] 0.0, 128
  %293 = vxpose.xlu0.b32.cont [14/16] 0.0, 128
  %294 = vxpose.xlu0.b32.cont [15/16] 0.0, 128
  %295 = vxpose.xlu0.b32.end [16/16] 0.0, 128
  %v296 = vpop.trf.xlu0
  %v297 = vpop.trf.xlu0
  %v298 = vpop.trf.xlu0
  %v299 = vpop.trf.xlu0
  %v300 = vpop.trf.xlu0
  %v301 = vpop.trf.xlu0
  %v302 = vpop.trf.xlu0
  %v303 = vpop.trf.xlu0
  %v304 = vpop.trf.xlu0
  %v305 = vpop.trf.xlu0
  %v306 = vpop.trf.xlu0
  %v307 = vpop.trf.xlu0
  %v308 = vpop.trf.xlu0
  %v309 = vpop.trf.xlu0
  %v310 = vpop.trf.xlu0
  %v311 = vpop.trf.xlu0
  %vm312 = vcmask 261120
  %v314 = vsel %vm312, %v296, 0
  %v317 = vsel %vm312, %v297, 0
  %v320 = vsel %vm312, %v298, 0
  %v323 = vsel %vm312, %v299, 0
  %325 = vmatprep.subr.mxu0 0.0
  %326 = vmatpush1.msra.mxu0 0.0
  %327 = vmatprep.subr.mxu0 0.0
  %328 = vmatpush1.msra.mxu0 0.0
  %329 = vmatprep.subr.mxu0 0.0
  %330 = vmatpush1.msra.mxu0 0.0
  %331 = vmatprep.subr.mxu0 0.0
  %332 = vmatpush1.msra.mxu0 0.0
  %333 = vmatprep.subr.mxu0 0.0
  %334 = vmatpush1.msra.mxu0 0.0
  %335 = vmatprep.subr.mxu0 0.0
  %336 = vmatpush1.msra.mxu0 0.0
  %337 = vmatprep.subr.mxu0 0.0
  %338 = vmatpush1.msra.mxu0 0.0
  %339 = vmatprep.subr.mxu0 0.0
  %340 = vmatpush1.msra.mxu0 0.0
  %341 = vmatprep.subr.mxu0 0.0
  %342 = vmatpush1.msra.mxu0 0.0
  %343 = vmatprep.subr.mxu0 0.0
  %344 = vmatpush1.msra.mxu0 0.0
  %345 = vmatprep.subr.mxu0 0.0
  %346 = vmatpush1.msra.mxu0 0.0
  %347 = vmatprep.subr.mxu0 0.0
  %348 = vmatpush1.msra.mxu0 0.0
  %349 = vmatprep.subr.mxu0 0.0
  %350 = vmatpush1.msra.mxu0 %v251
  %351 = vmatprep.subr.mxu0 0.0
  %352 = vmatpush1.msra.mxu0 %v250
  %353 = vmatprep.subr.mxu0 0.0
  %354 = vmatpush1.msra.mxu0 %v249
  %355 = vmatprep.subr.mxu0 0.0
  %356 = vmatpush1.msra.mxu0 %v248
  %357 = vmatprep.subr.mxu0 0.0
  %358 = vmatpush2.msra.mxu0 0.0
  %359 = vmatprep.subr.mxu0 0.0
  %360 = vmatpush2.msra.mxu0 0.0
  %361 = vmatprep.subr.mxu0 0.0
  %362 = vmatpush2.msra.mxu0 0.0
  %363 = vmatprep.subr.mxu0 0.0
  %364 = vmatpush2.msra.mxu0 0.0
  %365 = vmatprep.subr.mxu0 0.0
  %366 = vmatpush2.msra.mxu0 0.0
  %367 = vmatprep.subr.mxu0 0.0
  %368 = vmatpush2.msra.mxu0 0.0
  %369 = vmatprep.subr.mxu0 0.0
  %370 = vmatpush2.msra.mxu0 0.0
  %371 = vmatprep.subr.mxu0 0.0
  %372 = vmatpush2.msra.mxu0 0.0
  %373 = vmatprep.subr.mxu0 0.0
  %374 = vmatpush2.msra.mxu0 0.0
  %375 = vmatprep.subr.mxu0 0.0
  %376 = vmatpush2.msra.mxu0 0.0
  %377 = vmatprep.subr.mxu0 0.0
  %378 = vmatpush2.msra.mxu0 0.0
  %379 = vmatprep.subr.mxu0 0.0
  %380 = vmatpush2.msra.mxu0 0.0
  %381 = vmatprep.subr.mxu0 0.0
  %382 = vmatpush2.msra.mxu0 0.0
  %383 = vmatprep.subr.mxu0 0.0
  %384 = vmatpush2.msra.mxu0 0.0
  %385 = vmatprep.subr.mxu0 0.0
  %386 = vmatpush2.msra.mxu0 0.0
  %387 = vmatprep.subr.mxu0 0.0
  %388 = vmatpush2.msra.mxu0 0.0
  %389 = vmatprep.mubr.f32.mxu0 0.0
  %390 = vmatmul.mubr.f32.gmra.mxu0 %v314
  %v391 = vpop.f32.mrf.mxu0
  %v392 = vadd.f32 %v263, %v391
  %v393 = vpop.f32.mrf.mxu0
  %394 = vmatprep.mubr.f32.mxu0 0.0
  %395 = vmatmul.mubr.f32.gmra.mxu0 %v317
  %v396 = vpop.f32.mrf.mxu0
  %v397 = vadd.f32 %v268, %v396
  %v398 = vpop.f32.mrf.mxu0
  %399 = vmatprep.mubr.f32.mxu0 0.0
  %400 = vmatmul.mubr.f32.gmra.mxu0 %v320
  %v401 = vpop.f32.mrf.mxu0
  %v402 = vadd.f32 %v273, %v401
  %v403 = vpop.f32.mrf.mxu0
  %404 = vmatprep.mubr.f32.mxu0 0.0
  %405 = vmatmul.mubr.f32.gmra.mxu0 %v323
  %v406 = vpop.f32.mrf.mxu0
  %v407 = vadd.f32 %v278, %v406
  %v408 = vpop.f32.mrf.mxu0
  %409 = vdwg.mxu0
  %v410 = vtanh.pop %v392
  %v411 = vtanh.pop %v397
  %v412 = vtanh.pop %v402
  %v413 = vtanh.pop %v407
  %v414 = vld [vmem:[%s5] sm:$0x1]
  %v415 = vld [vmem:[#allocation2] sm:$0x1]
  %417 = vset.pattern.permute.xlu0 0
  %418 = vperm.xlu0 %417, %v415
  %v419 = vpop.permute.xlu0 %418
  %v421 = vlaneseq
  %v422 = vshrl.u32 %v421, 7
  %v423 = vsub.s32 0, %v422
  %v424 = vrot.slane %v419, %v423
  %v426 = vsel %vm312, %v414, 0
  %428 = vmatprep.subr.mxu0 0.0
  %429 = vmatpush1.msra.mxu0 0.0
  %430 = vmatprep.subr.mxu0 0.0
  %431 = vmatpush1.msra.mxu0 0.0
  %432 = vmatprep.subr.mxu0 0.0
  %433 = vmatpush1.msra.mxu0 0.0
  %434 = vmatprep.subr.mxu0 0.0
  %435 = vmatpush1.msra.mxu0 0.0
  %436 = vmatprep.subr.mxu0 0.0
  %437 = vmatpush1.msra.mxu0 0.0
  %438 = vmatprep.subr.mxu0 0.0
  %439 = vmatpush1.msra.mxu0 0.0
  %440 = vmatprep.subr.mxu0 0.0
  %441 = vmatpush1.msra.mxu0 0.0
  %442 = vmatprep.subr.mxu0 0.0
  %443 = vmatpush1.msra.mxu0 0.0
  %444 = vmatprep.subr.mxu0 0.0
  %445 = vmatpush1.msra.mxu0 0.0
  %446 = vmatprep.subr.mxu0 0.0
  %447 = vmatpush1.msra.mxu0 0.0
  %448 = vmatprep.subr.mxu0 0.0
  %449 = vmatpush1.msra.mxu0 0.0
  %450 = vmatprep.subr.mxu0 0.0
  %451 = vmatpush1.msra.mxu0 0.0
  %452 = vmatprep.subr.mxu0 0.0
  %453 = vmatpush1.msra.mxu0 %v413
  %454 = vmatprep.subr.mxu0 0.0
  %455 = vmatpush1.msra.mxu0 %v412
  %456 = vmatprep.subr.mxu0 0.0
  %457 = vmatpush1.msra.mxu0 %v411
  %458 = vmatprep.subr.mxu0 0.0
  %459 = vmatpush1.msra.mxu0 %v410
  %460 = vmatprep.subr.mxu0 0.0
  %461 = vmatpush2.msra.mxu0 0.0
  %462 = vmatprep.subr.mxu0 0.0
  %463 = vmatpush2.msra.mxu0 0.0
  %464 = vmatprep.subr.mxu0 0.0
  %465 = vmatpush2.msra.mxu0 0.0
  %466 = vmatprep.subr.mxu0 0.0
  %467 = vmatpush2.msra.mxu0 0.0
  %468 = vmatprep.subr.mxu0 0.0
  %469 = vmatpush2.msra.mxu0 0.0
  %470 = vmatprep.subr.mxu0 0.0
  %471 = vmatpush2.msra.mxu0 0.0
  %472 = vmatprep.subr.mxu0 0.0
  %473 = vmatpush2.msra.mxu0 0.0
  %474 = vmatprep.subr.mxu0 0.0
  %475 = vmatpush2.msra.mxu0 0.0
  %476 = vmatprep.subr.mxu0 0.0
  %477 = vmatpush2.msra.mxu0 0.0
  %478 = vmatprep.subr.mxu0 0.0
  %479 = vmatpush2.msra.mxu0 0.0
  %480 = vmatprep.subr.mxu0 0.0
  %481 = vmatpush2.msra.mxu0 0.0
  %482 = vmatprep.subr.mxu0 0.0
  %483 = vmatpush2.msra.mxu0 0.0
  %484 = vmatprep.subr.mxu0 0.0
  %485 = vmatpush2.msra.mxu0 0.0
  %486 = vmatprep.subr.mxu0 0.0
  %487 = vmatpush2.msra.mxu0 0.0
  %488 = vmatprep.subr.mxu0 0.0
  %489 = vmatpush2.msra.mxu0 0.0
  %490 = vmatprep.subr.mxu0 0.0
  %491 = vmatpush2.msra.mxu0 0.0
  %492 = vmatprep.mubr.f32.mxu0 0.0
  %493 = vmatmul.mubr.f32.gmra.mxu0 %v426
  %v494 = vpop.f32.mrf.mxu0
  %v495 = vadd.f32 %v424, %v494
  %v496 = vpop.f32.mrf.mxu0
  %497 = vdwg.mxu0
  %498 = vst [vmem:[%s7] sm:$0x1] %v495
  // Predicated region
  $region30: #{gaussian_critic_mlp.1} parent=0 // pred_check
    _
  $region31: #{gaussian_critic_mlp.1} parent=0 // pred_check_branch
    %500 = sbr.rel (0) target = $region33
  $region32: #{gaussian_critic_mlp.1} parent=0 // pred_region
    _
  $region33: #{gaussian_critic_mlp.1} parent=0 // pred_fallthru
    _
  // Predicated region
  $region34: #{gaussian_critic_mlp.1} parent=0 // pred_check
    _
  $region35: #{gaussian_critic_mlp.1} parent=0 // pred_check_branch
    %502 = sbr.rel (0) target = $region37
  $region36: #{gaussian_critic_mlp.1} parent=0 // pred_region
    _
  $region37: #{gaussian_critic_mlp.1} parent=0 // pred_fallthru
    _

</llo_original>
